<compile_context>
chip_gen: v7x
topology: tpu7x:2x2x1
jax: 0.10.0
libtpu: 0.0.40
codegen_flags: <defaults>
</compile_context>

<pallas_src>
import jax
import jax.numpy as jnp
import numpy as np
from jax.experimental import pallas as pl
from jax.experimental.pallas import tpu as pltpu


def _scse_kernel(x_ref, w1_ref, b1_ref, w2_ref, b2_ref, ws_ref, bs_ref, o_ref):
    # x_ref block: (Bb, C, HW) -- NCHW layout, spatial on the lane axis.
    x = x_ref[...].astype(jnp.float32)                       # (Bb, C, HW)

    # ---- cSE branch -------------------------------------------------------
    # AdaptiveAvgPool2d(1): mean over the spatial (lane) axis -> (Bb, C)
    mean = jnp.mean(x, axis=-1)                               # (Bb, C)
    # 1x1 conv C -> C//r (+ bias), ReLU
    z1 = jnp.dot(mean, w1_ref[...], preferred_element_type=jnp.float32) + b1_ref[...]
    z1 = jnp.maximum(z1, 0.0)                                 # (Bb, Cr)
    # 1x1 conv C//r -> C (+ bias), sigmoid
    z2 = jnp.dot(z1, w2_ref[...], preferred_element_type=jnp.float32) + b2_ref[...]
    cse = jax.nn.sigmoid(z2)                                  # (Bb, C) channel gate

    # ---- sSE branch -------------------------------------------------------
    # 1x1 conv C -> 1 (+ bias), sigmoid. Done as VPU broadcast-mul + channel
    # (sublane) reduce: avoids an N=1 MXU matmul on the critical path.
    ws = ws_ref[...]                                          # (C, 1)
    bias_s = jnp.reshape(bs_ref[...], (1, 1, 1))              # (1, 1, 1)
    s = jnp.sum(x * ws[None, :, :], axis=1, keepdims=True) + bias_s
    sse = jax.nn.sigmoid(s)                                   # (Bb, 1, HW) spatial gate

    # ---- combine (fused): x*cse + x*sse == x * (cse + sse) ----------------
    gate = cse[:, :, None] + sse                              # (Bb, C, HW)
    o_ref[...] = (x * gate).astype(o_ref.dtype)


@jax.jit
def scse_attention(x, w1, b1, w2, b2, ws, bs):
    """x: (B, C, H, W) NCHW. Returns NCHW output of same shape and dtype."""
    B, C, H, W = x.shape
    HW = H * W
    Cr = w1.shape[1]

    # Free view: collapse H,W. No transpose -> no extra HBM passes.
    xr = x.reshape(B, C, HW)

    # Batch block size: large blocks amortize the ~0.35us per-grid-step overhead;
    # keep >= 2 grid steps when B > 1 so both v7x TensorCores get fed.
    bytes_per_batch = C * HW * x.dtype.itemsize
    target_block_bytes = 2 * 1024 * 1024
    Bb = 1
    for d in range(1, B + 1):
        if B % d:
            continue
        if d * bytes_per_batch > target_block_bytes:
            continue
        if B > 1 and (B // d) < 2:
            continue
        Bb = d
    grid = (B // Bb,)
    # NOTE: for very large feature maps where one (C, HW) slab would not fit the
    # VMEM budget (notably v7x's 64 MiB), a two-pass HW-tiled scheme (mean/gate
    # accumulation pass, then a streaming apply pass) would be needed; not
    # required at these sizes.

    out = pl.pallas_call(
        _scse_kernel,
        out_shape=jax.ShapeDtypeStruct((B, C, HW), x.dtype),
        grid=grid,
        in_specs=[
            pl.BlockSpec((Bb, C, HW), lambda b: (b, 0, 0)),   # x (Bb batch elements)
            pl.BlockSpec((C, Cr), lambda b: (0, 0)),          # cSE conv1 weight
            pl.BlockSpec((1, Cr), lambda b: (0, 0)),          # cSE conv1 bias
            pl.BlockSpec((Cr, C), lambda b: (0, 0)),          # cSE conv2 weight
            pl.BlockSpec((1, C), lambda b: (0, 0)),           # cSE conv2 bias
            pl.BlockSpec((C, 1), lambda b: (0, 0)),           # sSE conv weight
            pl.BlockSpec((1, 1), lambda b: (0, 0)),           # sSE conv bias
        ],
        out_specs=pl.BlockSpec((Bb, C, HW), lambda b: (b, 0, 0)),
        compiler_params=pltpu.CompilerParams(
            dimension_semantics=("parallel",),
            vmem_limit_bytes=32 * 1024 * 1024,
        ),
    )(xr, w1, b1, w2, b2, ws, bs)

    return out.reshape(B, C, H, W)


def _reference(x, w1, b1, w2, b2, ws, bs):
    """Pure-JAX reference mirroring the PyTorch SCSEModule forward (NCHW)."""
    B, C, H, W = x.shape
    xr = x.reshape(B, C, H * W).astype(jnp.float32)            # (B, C, HW)
    mean = jnp.mean(xr, axis=-1)                               # (B, C)
    z1 = jnp.maximum(mean @ w1 + b1, 0.0)                      # (B, Cr)
    cse = jax.nn.sigmoid(z1 @ w2 + b2)                         # (B, C)
    s = jnp.sum(xr * ws[:, 0][None, :, None], axis=1, keepdims=True) + bs[0, 0]
    sse = jax.nn.sigmoid(s)                                    # (B, 1, HW)
    out = xr * cse[:, :, None] + xr * sse
    return out.reshape(B, C, H, W)


if __name__ == "__main__":
    # SCSEModule(in_channels=32, reduction=16) -> hidden channels Cr = 2
    B, C, H, W = 2, 32, 16, 16
    reduction = 16
    Cr = C // reduction

    key = jax.random.PRNGKey(0)
    kx, k1, k2, k3, k4, k5, k6 = jax.random.split(key, 7)

    x = jax.random.normal(kx, (B, C, H, W), dtype=jnp.float32)

    # Deterministic synthetic parameters (1x1 convs stored as (in, out) matrices).
    w1 = jax.random.normal(k1, (C, Cr), dtype=jnp.float32) * 0.1   # cSE conv1 weight
    b1 = jax.random.normal(k2, (1, Cr), dtype=jnp.float32) * 0.1   # cSE conv1 bias
    w2 = jax.random.normal(k3, (Cr, C), dtype=jnp.float32) * 0.1   # cSE conv2 weight
    b2 = jax.random.normal(k4, (1, C), dtype=jnp.float32) * 0.1    # cSE conv2 bias
    ws = jax.random.normal(k5, (C, 1), dtype=jnp.float32) * 0.1    # sSE conv weight
    bs = jax.random.normal(k6, (1, 1), dtype=jnp.float32) * 0.1    # sSE conv bias

    out = scse_attention(x, w1, b1, w2, b2, ws, bs)
    out = jax.block_until_ready(out)

    ref = _reference(x, w1, b1, w2, b2, ws, bs)
    assert out.shape == (B, C, H, W)
    np.testing.assert_allclose(np.asarray(out), np.asarray(ref), rtol=1e-5, atol=1e-5)

    print("KERNEL_OK")
</pallas_src>

<mosaic_0001>
module attributes {stable_mosaic.version = 11 : i64} {
  func.func @_scse_kernel(%arg0: i32, %arg1: memref<1x32x256xf32, #tpu.memory_space<vmem>>, %arg2: memref<32x2xf32, #tpu.memory_space<vmem>>, %arg3: memref<1x2xf32, #tpu.memory_space<vmem>>, %arg4: memref<2x32xf32, #tpu.memory_space<vmem>>, %arg5: memref<1x32xf32, #tpu.memory_space<vmem>>, %arg6: memref<32x1xf32, #tpu.memory_space<vmem>>, %arg7: memref<1x1xf32, #tpu.memory_space<vmem>>, %arg8: memref<1x32x256xf32, #tpu.memory_space<vmem>>) attributes {dimension_semantics = [#tpu.dimension_semantics<parallel>], iteration_bounds = array<i64: 2>, scalar_prefetch = 0 : i64, scratch_operands = 0 : i64, tpu.core_type = #tpu.core_type<tc>, window_params = [{transform_indices = @transform_0, window_bounds = array<i64: 1, 32, 256>}, {pipeline_mode = #tpu.pipeline_mode<synchronous>, transform_indices = @transform_1, window_bounds = array<i64: 32, 2>}, {pipeline_mode = #tpu.pipeline_mode<synchronous>, transform_indices = @transform_2, window_bounds = array<i64: 1, 2>}, {pipeline_mode = #tpu.pipeline_mode<synchronous>, transform_indices = @transform_3, window_bounds = array<i64: 2, 32>}, {pipeline_mode = #tpu.pipeline_mode<synchronous>, transform_indices = @transform_4, window_bounds = array<i64: 1, 32>}, {pipeline_mode = #tpu.pipeline_mode<synchronous>, transform_indices = @transform_5, window_bounds = array<i64: 32, 1>}, {pipeline_mode = #tpu.pipeline_mode<synchronous>, transform_indices = @transform_6, window_bounds = array<i64: 1, 1>}, {transform_indices = @transform_7, window_bounds = array<i64: 1, 32, 256>}]} {
    %c0 = arith.constant 0 : index
    %c0_0 = arith.constant 0 : index
    %c0_1 = arith.constant 0 : index
    %0 = vector.load %arg1[%c0, %c0_0, %c0_1] : memref<1x32x256xf32, #tpu.memory_space<vmem>>, vector<1x32x256xf32>
    %cst = arith.constant dense<0.000000e+00> : vector<1x32xf32>
    %1 = vector.multi_reduction <add>, %0, %cst [2] : vector<1x32x256xf32> to vector<1x32xf32>
    %cst_2 = arith.constant 2.560000e+02 : f32
    %2 = vector.broadcast %cst_2 : f32 to vector<1x32xf32>
    %3 = arith.divf %1, %2 : vector<1x32xf32>
    %c0_3 = arith.constant 0 : index
    %c0_4 = arith.constant 0 : index
    %4 = vector.load %arg2[%c0_3, %c0_4] : memref<32x2xf32, #tpu.memory_space<vmem>>, vector<32x2xf32>
    %cst_5 = arith.constant dense<0.000000e+00> : vector<1x2xf32>
    %5 = tpu.matmul %3, %4, %cst_5 {dimension_numbers = #tpu.dot_dimension_numbers<[1], [0], [0], [1], [0, 0, 1, 1], [], []>} : vector<1x32xf32>, vector<32x2xf32>, vector<1x2xf32> -> vector<1x2xf32>
    %c0_6 = arith.constant 0 : index
    %c0_7 = arith.constant 0 : index
    %6 = vector.load %arg3[%c0_6, %c0_7] : memref<1x2xf32, #tpu.memory_space<vmem>>, vector<1x2xf32>
    %7 = arith.addf %5, %6 : vector<1x2xf32>
    %cst_8 = arith.constant 0.000000e+00 : f32
    %8 = vector.broadcast %cst_8 : f32 to vector<1x2xf32>
    %9 = arith.maximumf %7, %8 : vector<1x2xf32>
    %c0_9 = arith.constant 0 : index
    %c0_10 = arith.constant 0 : index
    %10 = vector.load %arg4[%c0_9, %c0_10] : memref<2x32xf32, #tpu.memory_space<vmem>>, vector<2x32xf32>
    %cst_11 = arith.constant dense<0.000000e+00> : vector<1x32xf32>
    %11 = tpu.matmul %9, %10, %cst_11 {dimension_numbers = #tpu.dot_dimension_numbers<[1], [0], [0], [1], [0, 0, 1, 1], [], []>} : vector<1x2xf32>, vector<2x32xf32>, vector<1x32xf32> -> vector<1x32xf32>
    %c0_12 = arith.constant 0 : index
    %c0_13 = arith.constant 0 : index
    %12 = vector.load %arg5[%c0_12, %c0_13] : memref<1x32xf32, #tpu.memory_space<vmem>>, vector<1x32xf32>
    %13 = arith.addf %11, %12 : vector<1x32xf32>
    %14 = arith.negf %13 : vector<1x32xf32>
    %15 = math.exp %14 : vector<1x32xf32>
    %cst_14 = arith.constant 1.000000e+00 : f32
    %16 = vector.broadcast %cst_14 : f32 to vector<1x32xf32>
    %17 = arith.addf %16, %15 : vector<1x32xf32>
    %18 = arith.divf %16, %17 : vector<1x32xf32>
    %c0_15 = arith.constant 0 : index
    %c0_16 = arith.constant 0 : index
    %19 = vector.load %arg6[%c0_15, %c0_16] : memref<32x1xf32, #tpu.memory_space<vmem>>, vector<32x1xf32>
    %c0_17 = arith.constant 0 : index
    %c0_18 = arith.constant 0 : index
    %20 = vector.load %arg7[%c0_17, %c0_18] : memref<1x1xf32, #tpu.memory_space<vmem>>, vector<1x1xf32>
    %21 = vector.shape_cast %20 : vector<1x1xf32> to vector<1x1x1xf32>
    %22 = vector.shape_cast %19 : vector<32x1xf32> to vector<1x32x1xf32>
    %23 = vector.broadcast %22 : vector<1x32x1xf32> to vector<1x32x256xf32>
    %24 = arith.mulf %0, %23 : vector<1x32x256xf32>
    %cst_19 = arith.constant dense<0.000000e+00> : vector<1x256xf32>
    %25 = vector.multi_reduction <add>, %24, %cst_19 [1] : vector<1x32x256xf32> to vector<1x256xf32>
    %26 = vector.shape_cast %25 : vector<1x256xf32> to vector<1x1x256xf32>
    %27 = vector.broadcast %21 : vector<1x1x1xf32> to vector<1x1x256xf32>
    %28 = arith.addf %26, %27 : vector<1x1x256xf32>
    %29 = arith.negf %28 : vector<1x1x256xf32>
    %30 = math.exp %29 : vector<1x1x256xf32>
    %cst_20 = arith.constant 1.000000e+00 : f32
    %31 = vector.broadcast %cst_20 : f32 to vector<1x1x256xf32>
    %32 = arith.addf %31, %30 : vector<1x1x256xf32>
    %33 = arith.divf %31, %32 : vector<1x1x256xf32>
    %34 = vector.shape_cast %18 : vector<1x32xf32> to vector<1x32x1xf32>
    %35 = vector.broadcast %34 : vector<1x32x1xf32> to vector<1x32x256xf32>
    %36 = vector.broadcast %33 : vector<1x1x256xf32> to vector<1x32x256xf32>
    %37 = arith.addf %35, %36 : vector<1x32x256xf32>
    %38 = arith.mulf %0, %37 : vector<1x32x256xf32>
    %c0_21 = arith.constant 0 : index
    %c0_22 = arith.constant 0 : index
    %c0_23 = arith.constant 0 : index
    %39 = vector.load %arg8[%c0_21, %c0_22, %c0_23] : memref<1x32x256xf32, #tpu.memory_space<vmem>>, vector<1x32x256xf32>
    tpu.vector_store %arg8[%c0_21, %c0_22, %c0_23], %38 {strides = array<i32>} : memref<1x32x256xf32, #tpu.memory_space<vmem>>, vector<1x32x256xf32>,
    return
  }
  func.func @transform_0(%arg0: i32) -> (i32, i32, i32) {
    %c0_i32 = arith.constant 0 : i32
    %c0_i32_0 = arith.constant 0 : i32
    %c0_i32_1 = arith.constant 0 : i32
    return %arg0, %c0_i32, %c0_i32_0 : i32, i32, i32
  }
  func.func @transform_1(%arg0: i32) -> (i32, i32) {
    %c0_i32 = arith.constant 0 : i32
    %c0_i32_0 = arith.constant 0 : i32
    %c0_i32_1 = arith.constant 0 : i32
    return %c0_i32, %c0_i32_0 : i32, i32
  }
  func.func @transform_2(%arg0: i32) -> (i32, i32) {
    %c0_i32 = arith.constant 0 : i32
    %c0_i32_0 = arith.constant 0 : i32
    %c0_i32_1 = arith.constant 0 : i32
    return %c0_i32, %c0_i32_0 : i32, i32
  }
  func.func @transform_3(%arg0: i32) -> (i32, i32) {
    %c0_i32 = arith.constant 0 : i32
    %c0_i32_0 = arith.constant 0 : i32
    %c0_i32_1 = arith.constant 0 : i32
    return %c0_i32, %c0_i32_0 : i32, i32
  }
  func.func @transform_4(%arg0: i32) -> (i32, i32) {
    %c0_i32 = arith.constant 0 : i32
    %c0_i32_0 = arith.constant 0 : i32
    %c0_i32_1 = arith.constant 0 : i32
    return %c0_i32, %c0_i32_0 : i32, i32
  }
  func.func @transform_5(%arg0: i32) -> (i32, i32) {
    %c0_i32 = arith.constant 0 : i32
    %c0_i32_0 = arith.constant 0 : i32
    %c0_i32_1 = arith.constant 0 : i32
    return %c0_i32, %c0_i32_0 : i32, i32
  }
  func.func @transform_6(%arg0: i32) -> (i32, i32) {
    %c0_i32 = arith.constant 0 : i32
    %c0_i32_0 = arith.constant 0 : i32
    %c0_i32_1 = arith.constant 0 : i32
    return %c0_i32, %c0_i32_0 : i32, i32
  }
  func.func @transform_7(%arg0: i32) -> (i32, i32, i32) {
    %c0_i32 = arith.constant 0 : i32
    %c0_i32_0 = arith.constant 0 : i32
    %c0_i32_1 = arith.constant 0 : i32
    return %arg0, %c0_i32, %c0_i32_0 : i32, i32, i32
  }
}

</mosaic_0001>

<llo_original>
// kernel: scse_attention.1
$region0: #{scse_attention.1}
  #allocation0 [shape = 'u32[]', space=smem, size = 0x4, offset = 0x4, fixed_abs, tag = 'smem constant byte address 0x4 - core index']
  #allocation1 [shape = 'u32[144,128]{1,0:T(1,128)}', space=vmem, size = 0x12000, scoped, tag = 'internal scratch']
  #allocation2 [shape = 'f32[1,1]{1,0:T(1,128)S(1)}', space=vmem, size = 0x200, scoped, tag = 'scoped memory for scse_attention.1']
  %s0 = inlined_call_operand.vmem [shape: f32[2,32,256], index: 0, kind: input, shape index: {}]
  %s1 = inlined_call_operand.vmem [shape: f32[32,2], index: 1, kind: input, shape index: {}]
  %s2 = inlined_call_operand.vmem [shape: f32[1,2], index: 2, kind: input, shape index: {}]
  %s3 = inlined_call_operand.vmem [shape: f32[2,32], index: 3, kind: input, shape index: {}]
  %s4 = inlined_call_operand.vmem [shape: f32[1,32], index: 4, kind: input, shape index: {}]
  %s5 = inlined_call_operand.vmem [shape: f32[32,1], index: 5, kind: input, shape index: {}]
  %s6 = inlined_call_operand.<no memory space> [shape: f32[1,1], index: 6, kind: input, shape index: {}]
  %s7 = inlined_call_operand.vmem [shape: f32[2,32,256], index: 7, kind: output, shape index: {}]
  %s8 = sld [smem:[#allocation0]]
  $region61: #{scse_attention.1} parent=0
    _
  %s10 = ssub.s32 1, %s8
  %s11 = scalar_select 0, %s10, %s8
  %v12 = vstv %s6
  %13 = vst [vmem:[#allocation2] sm:$0x1] %v12
  loop: start=0, step=1, limit=4
  $region2: #{scse_attention.1} parent=0 // loop_pre_header
    _
  $region3: #{scse_attention.1} parent=0 // loop_header
    %s15 = sphi 0, %s19
    %p16 = scmp.ge.s32.totalorder %s15, 4
    %s25 = sphi 0, %s27
    %s28 = sphi 0, %s25
    %s29 = sphi 0, %s28
    %s45 = sphi 0, %s29
    %s49 = sphi 0, %s49
    %s51 = sphi 0, %s49
    %s52 = sphi 0, %s51
    %s66 = sphi 0, %s52
    %s70 = sphi 0, %s70
    %s72 = sphi 0, %s70
    %s73 = sphi 0, %s72
    %s87 = sphi 0, %s73
    %s91 = sphi 0, %s91
    %s93 = sphi 0, %s91
    %s94 = sphi 0, %s93
    %s108 = sphi 0, %s94
    %s112 = sphi 0, %s112
    %s114 = sphi 0, %s112
    %s115 = sphi 0, %s114
    %s129 = sphi 0, %s115
    %s133 = sphi 0, %s133
    %s135 = sphi 0, %s133
    %s136 = sphi 0, %s135
    %s150 = sphi 0, %s136
    %s154 = sphi 0, %s154
    %s156 = sphi 0, %s154
    %s157 = sphi 0, %s156
    %s171 = sphi 0, %s157
    %s177 = sphi 0, %s179
    %s180 = sphi 0, %s177
    %s181 = sphi 0, %s180
    %s197 = sphi 0, %s181
  $region4: #{scse_attention.1} parent=0 // loop_header_branch
    %18 = sbr.rel (%p16) target = $region8
  $region5: #{scse_attention.1} parent=0 // loop_body
    %s20 = ssub.s32 %s15, 1
    %s21 = ssub.s32 %s15, 2
    %s22 = sadd.s32 %s15, 1
    %s23 = ssub.s32 %s15, %s22
    %p24 = scmp.eq.s32.totalorder %s23, 0
    %s26 = sadd.s32 %s25, 1
    %s27 = scalar_select %p24, %s25, %s26
    %p30 = pneg %p24
    %p31 = scmp.eq.s32.totalorder %s15, 1
    %p32 = por %p30, %p31
    %p33 = scmp.ne.s32.totalorder %s25, %s28
    %p34 = scmp.eq.s32.totalorder %s15, 0
    %p35 = por %p33, %p34
    %p36 = scmp.ne.s32.totalorder %s25, %s28
    %p37 = scmp.eq.s32.totalorder %s20, 1
    %p38 = por %p36, %p37
    %p39 = scmp.ne.s32.totalorder %s28, %s29
    %p40 = scmp.eq.s32.totalorder %s20, 0
    %p41 = por %p39, %p40
    %p42 = scmp.ne.s32.totalorder %s28, %s29
    %p43 = scmp.eq.s32.totalorder %s21, 1
    %p44 = por %p42, %p43
    %p46 = scmp.ne.s32.totalorder %s29, %s45
    %p47 = scmp.eq.s32.totalorder %s21, 0
    %p48 = por %p46, %p47
    %s50 = sadd.s32 %s49, 1
    %p53 = scmp.eq.s32.totalorder %s15, 1
    %p54 = scmp.ne.s32.totalorder %s49, %s51
    %p55 = scmp.eq.s32.totalorder %s15, 0
    %p56 = por %p54, %p55
    %p57 = scmp.ne.s32.totalorder %s49, %s51
    %p58 = scmp.eq.s32.totalorder %s20, 1
    %p59 = por %p57, %p58
    %p60 = scmp.ne.s32.totalorder %s51, %s52
    %p61 = scmp.eq.s32.totalorder %s20, 0
    %p62 = por %p60, %p61
    %p63 = scmp.ne.s32.totalorder %s51, %s52
    %p64 = scmp.eq.s32.totalorder %s21, 1
    %p65 = por %p63, %p64
    %p67 = scmp.ne.s32.totalorder %s52, %s66
    %p68 = scmp.eq.s32.totalorder %s21, 0
    %p69 = por %p67, %p68
    %s71 = sadd.s32 %s70, 1
    %p74 = scmp.eq.s32.totalorder %s15, 1
    %p75 = scmp.ne.s32.totalorder %s70, %s72
    %p76 = scmp.eq.s32.totalorder %s15, 0
    %p77 = por %p75, %p76
    %p78 = scmp.ne.s32.totalorder %s70, %s72
    %p79 = scmp.eq.s32.totalorder %s20, 1
    %p80 = por %p78, %p79
    %p81 = scmp.ne.s32.totalorder %s72, %s73
    %p82 = scmp.eq.s32.totalorder %s20, 0
    %p83 = por %p81, %p82
    %p84 = scmp.ne.s32.totalorder %s72, %s73
    %p85 = scmp.eq.s32.totalorder %s21, 1
    %p86 = por %p84, %p85
    %p88 = scmp.ne.s32.totalorder %s73, %s87
    %p89 = scmp.eq.s32.totalorder %s21, 0
    %p90 = por %p88, %p89
    %s92 = sadd.s32 %s91, 1
    %p95 = scmp.eq.s32.totalorder %s15, 1
    %p96 = scmp.ne.s32.totalorder %s91, %s93
    %p97 = scmp.eq.s32.totalorder %s15, 0
    %p98 = por %p96, %p97
    %p99 = scmp.ne.s32.totalorder %s91, %s93
    %p100 = scmp.eq.s32.totalorder %s20, 1
    %p101 = por %p99, %p100
    %p102 = scmp.ne.s32.totalorder %s93, %s94
    %p103 = scmp.eq.s32.totalorder %s20, 0
    %p104 = por %p102, %p103
    %p105 = scmp.ne.s32.totalorder %s93, %s94
    %p106 = scmp.eq.s32.totalorder %s21, 1
    %p107 = por %p105, %p106
    %p109 = scmp.ne.s32.totalorder %s94, %s108
    %p110 = scmp.eq.s32.totalorder %s21, 0
    %p111 = por %p109, %p110
    %s113 = sadd.s32 %s112, 1
    %p116 = scmp.eq.s32.totalorder %s15, 1
    %p117 = scmp.ne.s32.totalorder %s112, %s114
    %p118 = scmp.eq.s32.totalorder %s15, 0
    %p119 = por %p117, %p118
    %p120 = scmp.ne.s32.totalorder %s112, %s114
    %p121 = scmp.eq.s32.totalorder %s20, 1
    %p122 = por %p120, %p121
    %p123 = scmp.ne.s32.totalorder %s114, %s115
    %p124 = scmp.eq.s32.totalorder %s20, 0
    %p125 = por %p123, %p124
    %p126 = scmp.ne.s32.totalorder %s114, %s115
    %p127 = scmp.eq.s32.totalorder %s21, 1
    %p128 = por %p126, %p127
    %p130 = scmp.ne.s32.totalorder %s115, %s129
    %p131 = scmp.eq.s32.totalorder %s21, 0
    %p132 = por %p130, %p131
    %s134 = sadd.s32 %s133, 1
    %p137 = scmp.eq.s32.totalorder %s15, 1
    %p138 = scmp.ne.s32.totalorder %s133, %s135
    %p139 = scmp.eq.s32.totalorder %s15, 0
    %p140 = por %p138, %p139
    %p141 = scmp.ne.s32.totalorder %s133, %s135
    %p142 = scmp.eq.s32.totalorder %s20, 1
    %p143 = por %p141, %p142
    %p144 = scmp.ne.s32.totalorder %s135, %s136
    %p145 = scmp.eq.s32.totalorder %s20, 0
    %p146 = por %p144, %p145
    %p147 = scmp.ne.s32.totalorder %s135, %s136
    %p148 = scmp.eq.s32.totalorder %s21, 1
    %p149 = por %p147, %p148
    %p151 = scmp.ne.s32.totalorder %s136, %s150
    %p152 = scmp.eq.s32.totalorder %s21, 0
    %p153 = por %p151, %p152
    %s155 = sadd.s32 %s154, 1
    %p158 = scmp.eq.s32.totalorder %s15, 1
    %p159 = scmp.ne.s32.totalorder %s154, %s156
    %p160 = scmp.eq.s32.totalorder %s15, 0
    %p161 = por %p159, %p160
    %p162 = scmp.ne.s32.totalorder %s154, %s156
    %p163 = scmp.eq.s32.totalorder %s20, 1
    %p164 = por %p162, %p163
    %p165 = scmp.ne.s32.totalorder %s156, %s157
    %p166 = scmp.eq.s32.totalorder %s20, 0
    %p167 = por %p165, %p166
    %p168 = scmp.ne.s32.totalorder %s156, %s157
    %p169 = scmp.eq.s32.totalorder %s21, 1
    %p170 = por %p168, %p169
    %p172 = scmp.ne.s32.totalorder %s157, %s171
    %p173 = scmp.eq.s32.totalorder %s21, 0
    %p174 = por %p172, %p173
    %s175 = ssub.s32 %s15, %s22
    %p176 = scmp.eq.s32.totalorder %s175, 0
    %s178 = sadd.s32 %s177, 1
    %s179 = scalar_select %p176, %s177, %s178
    %p182 = pneg %p176
    %p183 = scmp.eq.s32.totalorder %s15, 1
    %p184 = por %p182, %p183
    %p185 = scmp.ne.s32.totalorder %s177, %s180
    %p186 = scmp.eq.s32.totalorder %s15, 0
    %p187 = por %p185, %p186
    %p188 = scmp.ne.s32.totalorder %s177, %s180
    %p189 = scmp.eq.s32.totalorder %s20, 1
    %p190 = por %p188, %p189
    %p191 = scmp.ne.s32.totalorder %s180, %s181
    %p192 = scmp.eq.s32.totalorder %s20, 0
    %p193 = por %p191, %p192
    %p194 = scmp.ne.s32.totalorder %s180, %s181
    %p195 = scmp.eq.s32.totalorder %s21, 1
    %p196 = por %p194, %p195
    %p198 = scmp.ne.s32.totalorder %s181, %s197
    %p199 = scmp.eq.s32.totalorder %s21, 0
    %p200 = por %p198, %p199
    %p201 = scmp.le.s32.totalorder 1, %s15
    %p202 = scmp.lt.s32.totalorder %s15, 3
    %p203 = pnand %p201, %p202
    %p204 = pneg %p203
    // Predicated region
    $region9: #{scse_attention.1} parent=5 // pred_check
      _
    $region10: #{scse_attention.1} parent=5 // pred_check_branch
      %206 = sbr.rel (%p203) target = $region12
    $region11: #{scse_attention.1} parent=5 // pred_region
      %s207 = ssub.s32 %s15, 1
      // Predicated region
      $region13: #{scse_attention.1} parent=11 // pred_check
        %p208 = pneg %p62
      $region14: #{scse_attention.1} parent=11 // pred_check_branch
        %210 = sbr.rel (%p208) target = $region16
      $region15: #{scse_attention.1} parent=11 // pred_region
        _
      $region16: #{scse_attention.1} parent=11 // pred_fallthru
        _
      // Predicated region
      $region17: #{scse_attention.1} parent=11 // pred_check
        %p211 = pneg %p83
      $region18: #{scse_attention.1} parent=11 // pred_check_branch
        %213 = sbr.rel (%p211) target = $region20
      $region19: #{scse_attention.1} parent=11 // pred_region
        _
      $region20: #{scse_attention.1} parent=11 // pred_fallthru
        _
      // Predicated region
      $region21: #{scse_attention.1} parent=11 // pred_check
        %p214 = pneg %p104
      $region22: #{scse_attention.1} parent=11 // pred_check_branch
        %216 = sbr.rel (%p214) target = $region24
      $region23: #{scse_attention.1} parent=11 // pred_region
        _
      $region24: #{scse_attention.1} parent=11 // pred_fallthru
        _
      // Predicated region
      $region25: #{scse_attention.1} parent=11 // pred_check
        %p217 = pneg %p125
      $region26: #{scse_attention.1} parent=11 // pred_check_branch
        %219 = sbr.rel (%p217) target = $region28
      $region27: #{scse_attention.1} parent=11 // pred_region
        _
      $region28: #{scse_attention.1} parent=11 // pred_fallthru
        _
      // Predicated region
      $region29: #{scse_attention.1} parent=11 // pred_check
        %p220 = pneg %p146
      $region30: #{scse_attention.1} parent=11 // pred_check_branch
        %222 = sbr.rel (%p220) target = $region32
      $region31: #{scse_attention.1} parent=11 // pred_region
        _
      $region32: #{scse_attention.1} parent=11 // pred_fallthru
        _
      // Predicated region
      $region33: #{scse_attention.1} parent=11 // pred_check
        %p223 = pneg %p167
      $region34: #{scse_attention.1} parent=11 // pred_check_branch
        %225 = sbr.rel (%p223) target = $region36
      $region35: #{scse_attention.1} parent=11 // pred_region
        _
      $region36: #{scse_attention.1} parent=11 // pred_fallthru
        _
    $region12: #{scse_attention.1} parent=5 // pred_fallthru
      _
    %p226 = scmp.lt.s32.totalorder %s15, 2
    // Predicated region
    $region37: #{scse_attention.1} parent=5 // pred_check
      %p227 = pneg %p226
    $region38: #{scse_attention.1} parent=5 // pred_check_branch
      %229 = sbr.rel (%p227) target = $region40
    $region39: #{scse_attention.1} parent=5 // pred_region
      // Predicated region
      $region41: #{scse_attention.1} parent=39 // pred_check
        %p230 = pneg %p35
      $region42: #{scse_attention.1} parent=39 // pred_check_branch
        %232 = sbr.rel (%p230) target = $region44
      $region43: #{scse_attention.1} parent=39 // pred_region
        %p233 = scmp.lt.s32.totalorder %s15, 1
        %s234 = scalar_select %p233, %s15, 1
        %s235 = smul.addr %s234, 8
        %s236 = smul.addr %s235, 8
        %s237 = scalar_lea.vmem %s0, %s236
      $region44: #{scse_attention.1} parent=39 // pred_fallthru
        _
    $region40: #{scse_attention.1} parent=5 // pred_fallthru
      _
    %p238 = scmp.le.s32.totalorder 1, %s15
    %p239 = scmp.lt.s32.totalorder %s15, 3
    %p240 = pnand %p238, %p239
    %p241 = pneg %p240
    // Predicated region
    $region45: #{scse_attention.1} parent=5 // pred_check
      _
    $region46: #{scse_attention.1} parent=5 // pred_check_branch
      %243 = sbr.rel (%p240) target = $region48
    $region47: #{scse_attention.1} parent=5 // pred_region
      %s244 = ssub.s32 %s15, 1
      %p245 = scmp.lt.s32.totalorder %s20, 1
      %s246 = scalar_select %p245, %s20, 1
      %s247 = smul.addr %s246, 8
      %s248 = smul.addr %s247, 8
      %s249 = scalar_lea.vmem %s0, %s248
      %p250 = pneg %p41
      %p251 = pneg %p38
      %p252 = pneg %p62
      %p253 = pneg %p59
      %p254 = pneg %p83
      %p255 = pneg %p80
      %p256 = pneg %p104
      %p257 = pneg %p101
      %p258 = pneg %p125
      %p259 = pneg %p122
      %p260 = pneg %p146
      %p261 = pneg %p143
      %p262 = pneg %p167
      %p263 = pneg %p164
      %p264 = pneg %p193
      %p265 = pneg %p190
      %p266 = scmp.lt.s32.totalorder %s20, 1
      %s267 = scalar_select %p266, %s20, 1
      %s268 = smul.addr %s267, 8
      %s269 = smul.addr %s268, 8
      %s270 = scalar_lea.vmem %s7, %s269
      %p271 = scmp.lt.s32.totalorder %s20, 1
      %s272 = scalar_select %p271, %s20, 1
      %s273 = smul.addr %s272, 8
      %s274 = smul.addr %s273, 8
      %s275 = scalar_lea.vmem %s0, %s274
      %p276 = scmp.lt.s32.totalorder %s20, 1
      %s277 = scalar_select %p276, %s20, 1
      %s278 = smul.addr %s277, 8
      %s279 = smul.addr %s278, 8
      %s280 = scalar_lea.vmem %s7, %s279
      %v281 = vld [vmem:[%s275] sm:$0xff]
      %v282 = vld [vmem:[%s275 + $0x8] sm:$0xff]
      %v283 = vld [vmem:[%s275 + $0x10] sm:$0xff]
      %v284 = vld [vmem:[%s275 + $0x18] sm:$0xff]
      %v285 = vld [vmem:[%s275 + $0x20] sm:$0xff]
      %v286 = vld [vmem:[%s275 + $0x28] sm:$0xff]
      %v287 = vld [vmem:[%s275 + $0x30] sm:$0xff]
      %v288 = vld [vmem:[%s275 + $0x38] sm:$0xff]
      %v289 = vadd.f32 %v281, %v282
      %290 = vadd.xlane.f32.xlu0 %v289
      %v291 = vpop.xlane.xlu0 %290
      %v292 = vadd.f32 %v283, %v284
      %293 = vadd.xlane.f32.xlu0 %v292
      %v294 = vpop.xlane.xlu0 %293
      %v295 = vadd.f32 %v285, %v286
      %296 = vadd.xlane.f32.xlu0 %v295
      %v297 = vpop.xlane.xlu0 %296
      %v298 = vadd.f32 %v287, %v288
      %299 = vadd.xlane.f32.xlu0 %v298
      %v300 = vpop.xlane.xlu0 %299
      %v301 = vrcp.pop 256.0
      %v302 = vmul.f32 %v291, %v301
      %v303 = vmul.f32 %v294, %v301
      %v304 = vmul.f32 %v297, %v301
      %v305 = vmul.f32 %v300, %v301
      %v306 = vld [vmem:[%s1] sm:$0xff]
      %v307 = vld [vmem:[%s1 + $0x8] sm:$0xff]
      %v308 = vld [vmem:[%s1 + $0x10] sm:$0xff]
      %v309 = vld [vmem:[%s1 + $0x18] sm:$0xff]
      %v310 = vld [vmem:[%s2] sm:$0x1]
      %v315 = vlaneseq
      %v316 = vand.u32 %v315, 127
      %v317 = vlaneseq
      %v318 = vshrl.u32 %v317, 7
      %v319 = vsub.s32 %v316, %v318
      %v320 = vrot.slane %v302, %v319
      %v321 = vadd.s32 %v316, 4294967288
      %v322 = vlaneseq
      %v323 = vshrl.u32 %v322, 7
      %v324 = vsub.s32 %v321, %v323
      %v325 = vrot.slane %v303, %v324
      %vm326 = vcmask 130112
      %v327 = vsel %vm326, %v325, %v320
      %v328 = vadd.s32 %v316, 4294967280
      %v329 = vlaneseq
      %v330 = vshrl.u32 %v329, 7
      %v331 = vsub.s32 %v328, %v330
      %v332 = vrot.slane %v304, %v331
      %vm333 = vcmask 195712
      %v334 = vsel %vm333, %v332, %v327
      %v335 = vadd.s32 %v316, 4294967272
      %v336 = vlaneseq
      %v337 = vshrl.u32 %v336, 7
      %v338 = vsub.s32 %v335, %v337
      %v339 = vrot.slane %v305, %v338
      %vm340 = vcmask 261312
      %v341 = vsel %vm340, %v339, %v334
      %vm342 = vcmask 261120
      %v343 = vsel %vm342, %v341, 0
      %345 = vmatprep.subr.mxu0 0.0
      %346 = vmatpush1.msra.mxu0 %v306
      %347 = vmatprep.subr.mxu0 0.0
      %348 = vmatpush1.msra.mxu0 %v307
      %349 = vmatprep.subr.mxu0 0.0
      %350 = vmatpush1.msra.mxu0 %v308
      %351 = vmatprep.subr.mxu0 0.0
      %352 = vmatpush1.msra.mxu0 %v309
      %353 = vmatprep.subr.mxu0 0.0
      %354 = vmatpush1.msra.mxu0 0.0
      %355 = vmatprep.subr.mxu0 0.0
      %356 = vmatpush1.msra.mxu0 0.0
      %357 = vmatprep.subr.mxu0 0.0
      %358 = vmatpush1.msra.mxu0 0.0
      %359 = vmatprep.subr.mxu0 0.0
      %360 = vmatpush1.msra.mxu0 0.0
      %361 = vmatprep.subr.mxu0 0.0
      %362 = vmatpush1.msra.mxu0 0.0
      %363 = vmatprep.subr.mxu0 0.0
      %364 = vmatpush1.msra.mxu0 0.0
      %365 = vmatprep.subr.mxu0 0.0
      %366 = vmatpush1.msra.mxu0 0.0
      %367 = vmatprep.subr.mxu0 0.0
      %368 = vmatpush1.msra.mxu0 0.0
      %369 = vmatprep.subr.mxu0 0.0
      %370 = vmatpush1.msra.mxu0 0.0
      %371 = vmatprep.subr.mxu0 0.0
      %372 = vmatpush1.msra.mxu0 0.0
      %373 = vmatprep.subr.mxu0 0.0
      %374 = vmatpush1.msra.mxu0 0.0
      %375 = vmatprep.subr.mxu0 0.0
      %376 = vmatpush1.msra.mxu0 0.0
      %377 = vmatprep.subr.mxu0 0.0
      %378 = vmatpush1.msra.mxu0 0.0
      %379 = vmatprep.subr.mxu0 0.0
      %380 = vmatpush1.msra.mxu0 0.0
      %381 = vmatprep.subr.mxu0 0.0
      %382 = vmatpush1.msra.mxu0 0.0
      %383 = vmatprep.subr.mxu0 0.0
      %384 = vmatpush1.msra.mxu0 0.0
      %385 = vmatprep.subr.mxu0 0.0
      %386 = vmatpush1.msra.mxu0 0.0
      %387 = vmatprep.subr.mxu0 0.0
      %388 = vmatpush1.msra.mxu0 0.0
      %389 = vmatprep.subr.mxu0 0.0
      %390 = vmatpush1.msra.mxu0 0.0
      %391 = vmatprep.subr.mxu0 0.0
      %392 = vmatpush1.msra.mxu0 0.0
      %393 = vmatprep.subr.mxu0 0.0
      %394 = vmatpush1.msra.mxu0 0.0
      %395 = vmatprep.subr.mxu0 0.0
      %396 = vmatpush1.msra.mxu0 0.0
      %397 = vmatprep.subr.mxu0 0.0
      %398 = vmatpush1.msra.mxu0 0.0
      %399 = vmatprep.subr.mxu0 0.0
      %400 = vmatpush1.msra.mxu0 0.0
      %401 = vmatprep.subr.mxu0 0.0
      %402 = vmatpush1.msra.mxu0 0.0
      %403 = vmatprep.subr.mxu0 0.0
      %404 = vmatpush1.msra.mxu0 0.0
      %405 = vmatprep.subr.mxu0 0.0
      %406 = vmatpush1.msra.mxu0 0.0
      %407 = vmatprep.subr.mxu0 0.0
      %408 = vmatpush1.msra.mxu0 0.0
      %409 = vmatprep.mubr.f32.mxu0 0.0
      %410 = vmatmul.mubr.f32.gmra.mrb[0].mxu0 %v343
      %v411 = vpop.f32.mrb[0].mxu0
      %v412 = vadd.f32 %v310, %v411
      %v413 = vpop.f32.mrb[0].mxu0
      %414 = vdwg.mxu0
      %v415 = vmax.f32 %v412, 0.0
      %v416 = vld [vmem:[%s3] sm:$0x3]
      %v417 = vld [vmem:[%s4] sm:$0x1]
      %vm418 = vcmask 15360
      %v420 = vsel %vm418, %v415, 0
      %vm422 = vcmask 1041408
      %v424 = vsel %vm422, %v416, 0
      %426 = vmatprep.subr.mxu0 0.0
      %427 = vmatpush1.msra.mxu0 %v424
      %428 = vmatprep.subr.mxu0 0.0
      %429 = vmatpush1.msra.mxu0 0.0
      %430 = vmatprep.subr.mxu0 0.0
      %431 = vmatpush1.msra.mxu0 0.0
      %432 = vmatprep.subr.mxu0 0.0
      %433 = vmatpush1.msra.mxu0 0.0
      %434 = vmatprep.subr.mxu0 0.0
      %435 = vmatpush1.msra.mxu0 0.0
      %436 = vmatprep.subr.mxu0 0.0
      %437 = vmatpush1.msra.mxu0 0.0
      %438 = vmatprep.subr.mxu0 0.0
      %439 = vmatpush1.msra.mxu0 0.0
      %440 = vmatprep.subr.mxu0 0.0
      %441 = vmatpush1.msra.mxu0 0.0
      %442 = vmatprep.subr.mxu0 0.0
      %443 = vmatpush1.msra.mxu0 0.0
      %444 = vmatprep.subr.mxu0 0.0
      %445 = vmatpush1.msra.mxu0 0.0
      %446 = vmatprep.subr.mxu0 0.0
      %447 = vmatpush1.msra.mxu0 0.0
      %448 = vmatprep.subr.mxu0 0.0
      %449 = vmatpush1.msra.mxu0 0.0
      %450 = vmatprep.subr.mxu0 0.0
      %451 = vmatpush1.msra.mxu0 0.0
      %452 = vmatprep.subr.mxu0 0.0
      %453 = vmatpush1.msra.mxu0 0.0
      %454 = vmatprep.subr.mxu0 0.0
      %455 = vmatpush1.msra.mxu0 0.0
      %456 = vmatprep.subr.mxu0 0.0
      %457 = vmatpush1.msra.mxu0 0.0
      %458 = vmatprep.subr.mxu0 0.0
      %459 = vmatpush1.msra.mxu0 0.0
      %460 = vmatprep.subr.mxu0 0.0
      %461 = vmatpush1.msra.mxu0 0.0
      %462 = vmatprep.subr.mxu0 0.0
      %463 = vmatpush1.msra.mxu0 0.0
      %464 = vmatprep.subr.mxu0 0.0
      %465 = vmatpush1.msra.mxu0 0.0
      %466 = vmatprep.subr.mxu0 0.0
      %467 = vmatpush1.msra.mxu0 0.0
      %468 = vmatprep.subr.mxu0 0.0
      %469 = vmatpush1.msra.mxu0 0.0
      %470 = vmatprep.subr.mxu0 0.0
      %471 = vmatpush1.msra.mxu0 0.0
      %472 = vmatprep.subr.mxu0 0.0
      %473 = vmatpush1.msra.mxu0 0.0
      %474 = vmatprep.subr.mxu0 0.0
      %475 = vmatpush1.msra.mxu0 0.0
      %476 = vmatprep.subr.mxu0 0.0
      %477 = vmatpush1.msra.mxu0 0.0
      %478 = vmatprep.subr.mxu0 0.0
      %479 = vmatpush1.msra.mxu0 0.0
      %480 = vmatprep.subr.mxu0 0.0
      %481 = vmatpush1.msra.mxu0 0.0
      %482 = vmatprep.subr.mxu0 0.0
      %483 = vmatpush1.msra.mxu0 0.0
      %484 = vmatprep.subr.mxu0 0.0
      %485 = vmatpush1.msra.mxu0 0.0
      %486 = vmatprep.subr.mxu0 0.0
      %487 = vmatpush1.msra.mxu0 0.0
      %488 = vmatprep.subr.mxu0 0.0
      %489 = vmatpush1.msra.mxu0 0.0
      %490 = vmatprep.mubr.f32.mxu0 0.0
      %491 = vmatmul.mubr.f32.gmra.mrb[0].mxu0 %v420
      %v492 = vpop.f32.mrb[0].mxu0
      %v493 = vadd.f32 %v417, %v492
      %v494 = vpop.f32.mrb[0].mxu0
      %495 = vdwg.mxu0
      %v496 = vxor.u32 %v493, 2147483648
      %v497 = vmul.f32 %v496, 1.442695
      %v498 = vpow.pop %v497
      %v499 = vadd.f32 %v498, 1.0
      %v500 = vrcp.pop %v499
      %v501 = vmul.f32 1.0, %v500
      %v502 = vld [vmem:[%s5] sm:$0xff]
      %v503 = vld [vmem:[%s5 + $0x8] sm:$0xff]
      %v504 = vld [vmem:[%s5 + $0x10] sm:$0xff]
      %v505 = vld [vmem:[%s5 + $0x18] sm:$0xff]
      %v506 = vld [vmem:[#allocation2] sm:$0x1]
      %508 = vset.pattern.permute.xlu0 0
      %509 = vperm.xlu0 %508, %v502
      %v510 = vpop.permute.xlu0 %509
      %513 = vset.pattern.permute.xlu0 0
      %514 = vperm.xlu0 %513, %v503
      %v515 = vpop.permute.xlu0 %514
      %518 = vset.pattern.permute.xlu0 0
      %519 = vperm.xlu0 %518, %v504
      %v520 = vpop.permute.xlu0 %519
      %523 = vset.pattern.permute.xlu0 0
      %524 = vperm.xlu0 %523, %v505
      %v525 = vpop.permute.xlu0 %524
      %v527 = vmul.f32 %v281, %v510
      %v528 = vmul.f32 %v282, %v510
      %v529 = vmul.f32 %v283, %v515
      %v530 = vmul.f32 %v284, %v515
      %v531 = vmul.f32 %v285, %v520
      %v532 = vmul.f32 %v286, %v520
      %v533 = vmul.f32 %v287, %v525
      %v534 = vmul.f32 %v288, %v525
      %v535 = vadd.f32 %v527, %v529
      %v536 = vadd.f32 %v535, %v531
      %v537 = vadd.f32 %v536, %v533
      %v538 = vrot.slane %v537, 4
      %v539 = vadd.f32 %v537, %v538
      %v540 = vrot.slane %v539, 2
      %v541 = vadd.f32 %v539, %v540
      %v542 = vrot.slane %v541, 1
      %v543 = vadd.f32 %v541, %v542
      %v544 = vadd.f32 %v528, %v530
      %v545 = vadd.f32 %v544, %v532
      %v546 = vadd.f32 %v545, %v534
      %v547 = vrot.slane %v546, 4
      %v548 = vadd.f32 %v546, %v547
      %v549 = vrot.slane %v548, 2
      %v550 = vadd.f32 %v548, %v549
      %v551 = vrot.slane %v550, 1
      %v552 = vadd.f32 %v550, %v551
      %554 = vset.pattern.permute.xlu0 0
      %555 = vperm.xlu0 %554, %v506
      %v556 = vpop.permute.xlu0 %555
      %v558 = vlaneseq
      %v559 = vshrl.u32 %v558, 7
      %v560 = vsub.s32 0, %v559
      %v561 = vrot.slane %v556, %v560
      %v562 = vadd.f32 %v543, %v561
      %v563 = vadd.f32 %v552, %v561
      %v564 = vxor.u32 %v562, 2147483648
      %v565 = vxor.u32 %v563, 2147483648
      %v566 = vmul.f32 %v564, 1.442695
      %v567 = vpow.pop %v566
      %v568 = vmul.f32 %v565, 1.442695
      %v569 = vpow.pop %v568
      %v570 = vadd.f32 %v567, 1.0
      %v571 = vadd.f32 %v569, 1.0
      %v572 = vrcp.pop %v570
      %v573 = vmul.f32 1.0, %v572
      %v574 = vrcp.pop %v571
      %v575 = vmul.f32 1.0, %v574
      %v576 = vlaneseq
      %v577 = vshrl.u32 %v576, 7
      %v578 = vsub.s32 0, %v577
      %v579 = vrot.slane %v501, %v578
      %581 = vbcast.lane.b32.xlu0 %v579, 256
      %v582 = vpop.permute.xlu0 %581
      %s584 = sor.u32 256, 8
      %585 = vbcast.lane.b32.xlu0 %v579, %s584
      %v586 = vpop.permute.xlu0 %585
      %s588 = sor.u32 256, 16
      %589 = vbcast.lane.b32.xlu0 %v579, %s588
      %v590 = vpop.permute.xlu0 %589
      %s592 = sor.u32 256, 24
      %593 = vbcast.lane.b32.xlu0 %v579, %s592
      %v594 = vpop.permute.xlu0 %593
      %v595 = vadd.f32 %v582, %v573
      %v596 = vadd.f32 %v582, %v575
      %v597 = vadd.f32 %v586, %v573
      %v598 = vadd.f32 %v586, %v575
      %v599 = vadd.f32 %v590, %v573
      %v600 = vadd.f32 %v590, %v575
      %v601 = vadd.f32 %v594, %v573
      %v602 = vadd.f32 %v594, %v575
      %v603 = vmul.f32 %v281, %v595
      %v604 = vmul.f32 %v282, %v596
      %v605 = vmul.f32 %v283, %v597
      %v606 = vmul.f32 %v284, %v598
      %v607 = vmul.f32 %v285, %v599
      %v608 = vmul.f32 %v286, %v600
      %v609 = vmul.f32 %v287, %v601
      %v610 = vmul.f32 %v288, %v602
      %611 = vst [vmem:[%s280] sm:$0xff] %v603
      %612 = vst [vmem:[%s280 + $0x8] sm:$0xff] %v604
      %613 = vst [vmem:[%s280 + $0x10] sm:$0xff] %v605
      %614 = vst [vmem:[%s280 + $0x18] sm:$0xff] %v606
      %615 = vst [vmem:[%s280 + $0x20] sm:$0xff] %v607
      %616 = vst [vmem:[%s280 + $0x28] sm:$0xff] %v608
      %617 = vst [vmem:[%s280 + $0x30] sm:$0xff] %v609
      %618 = vst [vmem:[%s280 + $0x38] sm:$0xff] %v610
      %p619 = scmp.lt.s32.totalorder %s20, 1
      %s620 = scalar_select %p619, %s20, 1
      %s621 = smul.addr %s620, 8
      %s622 = smul.addr %s621, 8
      %s623 = scalar_lea.vmem %s7, %s622
      // Predicated region
      $region49: #{scse_attention.1} parent=47 // pred_check
        %p624 = pneg %p190
      $region50: #{scse_attention.1} parent=47 // pred_check_branch
        %626 = sbr.rel (%p624) target = $region52
      $region51: #{scse_attention.1} parent=47 // pred_region
        _
      $region52: #{scse_attention.1} parent=47 // pred_fallthru
        _
    $region48: #{scse_attention.1} parent=5 // pred_fallthru
      _
    %p627 = scmp.le.s32.totalorder 2, %s15
    // Predicated region
    $region53: #{scse_attention.1} parent=5 // pred_check
      %p628 = pneg %p627
    $region54: #{scse_attention.1} parent=5 // pred_check_branch
      %630 = sbr.rel (%p628) target = $region56
    $region55: #{scse_attention.1} parent=5 // pred_region
      %s631 = ssub.s32 %s15, 2
      // Predicated region
      $region57: #{scse_attention.1} parent=55 // pred_check
        %p632 = pneg %p196
      $region58: #{scse_attention.1} parent=55 // pred_check_branch
        %634 = sbr.rel (%p632) target = $region60
      $region59: #{scse_attention.1} parent=55 // pred_region
        %p635 = scmp.lt.s32.totalorder %s21, 1
        %s636 = scalar_select %p635, %s21, 1
        %s637 = smul.addr %s636, 8
        %s638 = smul.addr %s637, 8
        %s639 = scalar_lea.vmem %s7, %s638
      $region60: #{scse_attention.1} parent=55 // pred_fallthru
        _
    $region56: #{scse_attention.1} parent=5 // pred_fallthru
      _
  $region6: #{scse_attention.1} parent=0 // loop_footer
    %s19 = sadd.s32 1, %s15
  $region7: #{scse_attention.1} parent=0 // loop_footer_branch
    %14 = sbr.rel target = $region3
  $region8: #{scse_attention.1} parent=0 // loop_exit
    _

</llo_original>
